<compile_context>
chip_gen: v5e
topology: v5e:2x2
jax: 0.10.0
libtpu: 0.0.40
codegen_flags: <defaults>
</compile_context>

<pallas_src>
import jax
import jax.numpy as jnp
from jax.experimental import pallas as pl
from jax.experimental.pallas import tpu as pltpu


def _round_up(x: int, m: int) -> int:
    return ((x + m - 1) // m) * m


def _round_down(x: int, m: int) -> int:
    return (x // m) * m


def _packing(dtype) -> int:
    # Sublane packing (rows per 32-bit sublane group) for a dtype.
    return {4: 8, 2: 16, 1: 32}.get(jnp.dtype(dtype).itemsize, 8)


def _vmem_capacity_bytes() -> int:
    try:
        cap = int(pltpu.get_tpu_info().vmem_capacity_bytes)
        if cap > 0:
            return cap
    except Exception:
        pass
    # Conservative default (v7x per-TensorCore VMEM).
    return 64 * 1024 * 1024


def _kv_proj_kernel(x_ref, w_ref, bv_ref, kv_ref):
    """One row tile of the fused K/V projection, written in cache layout.

    x_ref  : (tm, D)            input rows (one batch element, tm seq rows)
    w_ref  : (D, 2D)            fused weight [Wk^T | Wv^T]   (y = x @ w)
    bv_ref : (1, D)             value bias
    kv_ref : (2, H, tm, hd)     output block of [B, 2, H, S, hd]
    """
    d = x_ref.shape[-1]
    n_head = kv_ref.shape[1]
    hd = kv_ref.shape[3]
    out_dt = kv_ref.dtype

    x = x_ref[...]
    if x.dtype != w_ref.dtype:
        # In-kernel cast (VPU has slack under the MXU); avoids a separate
        # XLA cast pass over x in the wrapper.
        x = x.astype(w_ref.dtype)

    y = jnp.dot(x, w_ref[...], preferred_element_type=jnp.float32)  # (tm, 2D)
    k = y[:, :d]
    v = y[:, d:] + bv_ref[...].astype(jnp.float32)   # bias only on the v half

    # Head split done here (per-head masked lane stores) so no full-tensor
    # transpose is needed in the wrapper.
    for h in range(n_head):
        lo = h * hd
        kv_ref[0, h] = k[:, lo:lo + hd].astype(out_dt)
        kv_ref[1, h] = v[:, lo:lo + hd].astype(out_dt)


def prepare_kv_weights(wk, wv, bv, compute_dtype=None):
    """One-time weight prep (per model load, NOT per forward call).

    wk, wv : [n_state, n_state] in PyTorch Linear layout ([out, in])
    bv     : [n_state]
    Returns (w_fused [D, 2D] = [Wk^T | Wv^T], bv2d [1, D]).
    Pass compute_dtype=jnp.bfloat16 for bf16 MXU throughput (accumulation
    stays f32 inside the kernel; bias stays f32).
    """
    D = wk.shape[0]
    w_fused = jnp.concatenate([wk.T, wv.T], axis=1)          # [D, 2D]
    if compute_dtype is not None:
        w_fused = w_fused.astype(compute_dtype)
    bv2d = bv.reshape(1, D)
    return w_fused, bv2d


def _pick_s_tile(S, B, D, in_b, w_b, out_b, align, tm_target, budget,
                 w_bufs, x_bufs):
    """Choose the seq-row tile from the VMEM budget, balanced & aligned."""
    # Per-row-of-x VMEM: x tiles (x_bufs) + stacked k/v output tiles
    # (2 buffers, 2*D elems/row) + the f32 (tm, 2D) matmul result and ~one
    # more full-width f32 temporary for the epilogue.
    per_row = D * (x_bufs * in_b + 4 * out_b + 16)
    fixed = w_bufs * 2 * D * D * w_b + (4 << 20)      # resident weight + slack
    avail = budget - fixed

    tm_cap = max(align, min(int(tm_target), int(avail // per_row)))
    tm_cap = max(align, _round_down(tm_cap, align))

    n_s = 1 if tm_cap >= S else pl.cdiv(S, tm_cap)
    # v7x megacore: keep the total grid-step count even when it is cheap to,
    # so ("parallel","parallel") sharding balances the two TensorCores.
    if (B * n_s) % 2 == 1 and S >= 2 * align:
        n_s += 1
    # Balanced tiles (no whole-tile padding): near-equal rows per grid step.
    tm = max(align, _round_up(pl.cdiv(S, n_s), align))
    if tm >= S:
        tm = S                     # block dim == full array dim: always legal
    n_s = pl.cdiv(S, tm)
    return tm, n_s


def kv_linear_block(xa, w_fused, bv2d, n_head, *, out_dtype=None,
                    tm_target=1024, x_buffers=2):
    """Pallas implementation of KVLinearBlock.forward.

    xa        : [B, S, n_state]
    w_fused   : [n_state, 2*n_state]   (from prepare_kv_weights)
    bv2d      : [1, n_state]
    out_dtype : KV-cache dtype (e.g. jnp.bfloat16); defaults to xa.dtype.
    x_buffers : input-tile pipeline depth (3 can help on v5e if the x DMA
                stream is exposed; default 2 = standard double buffering).
    returns cross_past_key_value : [B, 2, n_head, S, head_size]
    """
    B, S, D = xa.shape
    assert D % n_head == 0
    assert w_fused.shape == (D, 2 * D)
    assert bv2d.shape == (1, D)
    hd = D // n_head
    if out_dtype is None:
        out_dtype = xa.dtype

    in_b = jnp.dtype(xa.dtype).itemsize
    w_b = jnp.dtype(w_fused.dtype).itemsize
    out_b = jnp.dtype(out_dtype).itemsize
    bv_b = jnp.dtype(bv2d.dtype).itemsize
    # Sublane alignment must satisfy BOTH the input and the (possibly more
    # tightly packed) output dtype.
    align = max(_packing(xa.dtype), _packing(out_dtype))

    cap = _vmem_capacity_bytes()
    budget = int(0.70 * cap)          # tile-sizing budget
    vmem_limit = int(0.80 * cap)      # compiler limit: headroom on v7x,
                                      # ~102 MiB of 128 MiB on v5e/v6e.

    cost = pl.CostEstimate(
        flops=4 * B * S * D * D,                     # (B*S, D) x (D, 2D)
        transcendentals=0,
        bytes_accessed=(B * S * D * in_b + 2 * D * D * w_b + D * bv_b
                        + 2 * B * S * D * out_b),
    )

    def call(single_buffer_weights):
        w_bufs = 1 if single_buffer_weights else 2
        tm, n_s = _pick_s_tile(S, B, D, in_b, w_b, out_b, align,
                               tm_target, budget, w_bufs, x_buffers)

        def invariant_spec(shape):
            # Loop-invariant operand: constant index_map; single-buffer it
            # when supported (saves VMEM, important on v7x's 64 MiB).
            if single_buffer_weights:
                return pl.BlockSpec(shape, lambda b, i: (0,) * len(shape),
                                    pipeline_mode=pl.Buffered(1))
            return pl.BlockSpec(shape, lambda b, i: (0,) * len(shape))

        if x_buffers != 2:
            x_spec = pl.BlockSpec((None, tm, D), lambda b, i: (b, i, 0),
                                  pipeline_mode=pl.Buffered(x_buffers))
        else:
            x_spec = pl.BlockSpec((None, tm, D), lambda b, i: (b, i, 0))

        return pl.pallas_call(
            _kv_proj_kernel,
            out_shape=jax.ShapeDtypeStruct((B, 2, n_head, S, hd), out_dtype),
            grid=(B, n_s),
            in_specs=[
                x_spec,                                # streamed x row tiles
                invariant_spec((D, 2 * D)),            # fused [Wk^T|Wv^T]
                invariant_spec((1, D)),                # value bias
            ],
            # Output written directly in the final cache layout — no wrapper
            # transpose.  Last block dim hd == full array dim, so it is legal
            # for any head size.
            out_specs=pl.BlockSpec((None, 2, n_head, tm, hd),
                                   lambda b, i: (b, 0, 0, i, 0)),
            compiler_params=pltpu.CompilerParams(
                dimension_semantics=("parallel", "parallel"),
                vmem_limit_bytes=vmem_limit,
            ),
            cost_estimate=cost,
        )(xa, w_fused, bv2d)

    try:
        return call(True)
    except Exception:
        # pl.Buffered(1) (single-buffered resident weights) may not be
        # supported by the installed Pallas.  This fallback differs only in
        # pipelining / VMEM use — the row tile is re-derived for
        # double-buffered weights — never in numerics.  Any genuine kernel
        # error re-raises from this path as well, so nothing is permanently
        # swallowed.  (Manual weight residency via pl.ANY + DMA-once was
        # rejected: per-core scratch init breaks under v7x megacore.)
        return call(False)


def _reference(xa, wk, wv, bv, n_head):
    B, S, D = xa.shape
    hd = D // n_head
    key = (xa @ wk.T).reshape(B, S, n_head, hd).transpose(0, 2, 1, 3)
    val = (xa @ wv.T + bv).reshape(B, S, n_head, hd).transpose(0, 2, 1, 3)
    return jnp.concatenate([key[:, None], val[:, None]], axis=1)


if __name__ == "__main__":
    # Small shapes consistent with the module's forward.
    B, S = 2, 8
    n_state, n_head = 32, 4
    hd = n_state // n_head

    key0 = jax.random.PRNGKey(0)
    k_xa, k_wk, k_wv, k_bv = jax.random.split(key0, 4)

    xa = jax.random.normal(k_xa, (B, S, n_state), jnp.float32)
    wk = jax.random.normal(k_wk, (n_state, n_state), jnp.float32) * 0.05
    wv = jax.random.normal(k_wv, (n_state, n_state), jnp.float32) * 0.05
    bv = jax.random.normal(k_bv, (n_state,), jnp.float32) * 0.05

    ref = _reference(xa, wk, wv, bv, n_head)

    # f32 weights, f32 output.
    w_f32, bv2d = prepare_kv_weights(wk, wv, bv)
    out = jax.block_until_ready(kv_linear_block(xa, w_f32, bv2d, n_head))
    assert out.shape == (B, 2, n_head, S, hd)
    assert jnp.allclose(out, ref, atol=1e-5, rtol=1e-5)

    # bf16 weights + bf16 KV-cache output (activation cast happens in-kernel).
    w_bf16, bv2d_bf = prepare_kv_weights(wk, wv, bv, compute_dtype=jnp.bfloat16)
    out_bf = jax.block_until_ready(
        kv_linear_block(xa, w_bf16, bv2d_bf, n_head, out_dtype=jnp.bfloat16))
    assert out_bf.shape == (B, 2, n_head, S, hd)
    assert jnp.allclose(out_bf.astype(jnp.float32), ref, atol=5e-2, rtol=5e-2)

    # Ragged sequence length (S not a multiple of the sublane pack / tile):
    # exercises the masked edge-block path (no padding, no asserts).
    xa_r = jax.random.normal(key0, (1, 5, n_state), jnp.float32)
    out_r = jax.block_until_ready(
        kv_linear_block(xa_r, w_f32, bv2d, n_head, tm_target=8))
    ref_r = _reference(xa_r, wk, wv, bv, n_head)
    assert out_r.shape == (1, 2, n_head, 5, hd)
    assert jnp.allclose(out_r, ref_r, atol=1e-5, rtol=1e-5)

    print("KERNEL_OK")
</pallas_src>

<mosaic_0001>
module attributes {stable_mosaic.version = 11 : i64} {
  func.func @_kv_proj_kernel(%arg0: i32, %arg1: i32, %arg2: memref<1x8x32xf32, #tpu.memory_space<vmem>>, %arg3: memref<32x64xf32, #tpu.memory_space<vmem>>, %arg4: memref<1x32xf32, #tpu.memory_space<vmem>>, %arg5: memref<1x2x4x8x8xf32, #tpu.memory_space<vmem>>) attributes {dimension_semantics = [#tpu.dimension_semantics<parallel>, #tpu.dimension_semantics<parallel>], iteration_bounds = array<i64: 2, 1>, scalar_prefetch = 0 : i64, scratch_operands = 0 : i64, tpu.core_type = #tpu.core_type<tc>, window_params = [{transform_indices = @transform_0, window_bounds = array<i64: 1, 8, 32>}, {pipeline_mode = #tpu.pipeline_mode<synchronous>, transform_indices = @transform_1, window_bounds = array<i64: 32, 64>}, {pipeline_mode = #tpu.pipeline_mode<synchronous>, transform_indices = @transform_2, window_bounds = array<i64: 1, 32>}, {transform_indices = @transform_3, window_bounds = array<i64: 1, 2, 4, 8, 8>}]} {
    %c0 = arith.constant 0 : index
    %c0_0 = arith.constant 0 : index
    %c0_1 = arith.constant 0 : index
    %0 = vector.load %arg2[%c0, %c0_0, %c0_1] : memref<1x8x32xf32, #tpu.memory_space<vmem>>, vector<1x8x32xf32>
    %1 = vector.shape_cast %0 : vector<1x8x32xf32> to vector<8x32xf32>
    %c0_2 = arith.constant 0 : index
    %c0_3 = arith.constant 0 : index
    %2 = vector.load %arg3[%c0_2, %c0_3] : memref<32x64xf32, #tpu.memory_space<vmem>>, vector<32x64xf32>
    %cst = arith.constant dense<0.000000e+00> : vector<8x64xf32>
    %3 = tpu.matmul %1, %2, %cst {dimension_numbers = #tpu.dot_dimension_numbers<[1], [0], [0], [1], [0, 0, 1, 1], [], []>} : vector<8x32xf32>, vector<32x64xf32>, vector<8x64xf32> -> vector<8x64xf32>
    %4 = vector.extract_strided_slice %3 {offsets = [0, 0], sizes = [8, 32], strides = [1, 1]} : vector<8x64xf32> to vector<8x32xf32>
    %5 = vector.extract_strided_slice %3 {offsets = [0, 32], sizes = [8, 32], strides = [1, 1]} : vector<8x64xf32> to vector<8x32xf32>
    %c0_4 = arith.constant 0 : index
    %c0_5 = arith.constant 0 : index
    %6 = vector.load %arg4[%c0_4, %c0_5] : memref<1x32xf32, #tpu.memory_space<vmem>>, vector<1x32xf32>
    %7 = vector.broadcast %6 : vector<1x32xf32> to vector<8x32xf32>
    %8 = arith.addf %5, %7 : vector<8x32xf32>
    %9 = vector.extract_strided_slice %4 {offsets = [0, 0], sizes = [8, 8], strides = [1, 1]} : vector<8x32xf32> to vector<8x8xf32>
    %c0_6 = arith.constant 0 : index
    %c0_7 = arith.constant 0 : index
    %c0_8 = arith.constant 0 : index
    %c0_9 = arith.constant 0 : index
    %c0_10 = arith.constant 0 : index
    %10 = vector.load %arg5[%c0_6, %c0_7, %c0_8, %c0_9, %c0_10] : memref<1x2x4x8x8xf32, #tpu.memory_space<vmem>>, vector<1x1x1x8x8xf32>
    %11 = vector.shape_cast %10 : vector<1x1x1x8x8xf32> to vector<8x8xf32>
    %12 = vector.shape_cast %9 : vector<8x8xf32> to vector<1x1x1x8x8xf32>
    tpu.vector_store %arg5[%c0_6, %c0_7, %c0_8, %c0_9, %c0_10], %12 {strides = array<i32>} : memref<1x2x4x8x8xf32, #tpu.memory_space<vmem>>, vector<1x1x1x8x8xf32>,
    %13 = vector.extract_strided_slice %8 {offsets = [0, 0], sizes = [8, 8], strides = [1, 1]} : vector<8x32xf32> to vector<8x8xf32>
    %c0_11 = arith.constant 0 : index
    %c1 = arith.constant 1 : index
    %c0_12 = arith.constant 0 : index
    %c0_13 = arith.constant 0 : index
    %c0_14 = arith.constant 0 : index
    %14 = vector.load %arg5[%c0_11, %c1, %c0_12, %c0_13, %c0_14] : memref<1x2x4x8x8xf32, #tpu.memory_space<vmem>>, vector<1x1x1x8x8xf32>
    %15 = vector.shape_cast %14 : vector<1x1x1x8x8xf32> to vector<8x8xf32>
    %16 = vector.shape_cast %13 : vector<8x8xf32> to vector<1x1x1x8x8xf32>
    tpu.vector_store %arg5[%c0_11, %c1, %c0_12, %c0_13, %c0_14], %16 {strides = array<i32>} : memref<1x2x4x8x8xf32, #tpu.memory_space<vmem>>, vector<1x1x1x8x8xf32>,
    %17 = vector.extract_strided_slice %4 {offsets = [0, 8], sizes = [8, 8], strides = [1, 1]} : vector<8x32xf32> to vector<8x8xf32>
    %c0_15 = arith.constant 0 : index
    %c0_16 = arith.constant 0 : index
    %c1_17 = arith.constant 1 : index
    %c0_18 = arith.constant 0 : index
    %c0_19 = arith.constant 0 : index
    %18 = vector.load %arg5[%c0_15, %c0_16, %c1_17, %c0_18, %c0_19] : memref<1x2x4x8x8xf32, #tpu.memory_space<vmem>>, vector<1x1x1x8x8xf32>
    %19 = vector.shape_cast %18 : vector<1x1x1x8x8xf32> to vector<8x8xf32>
    %20 = vector.shape_cast %17 : vector<8x8xf32> to vector<1x1x1x8x8xf32>
    tpu.vector_store %arg5[%c0_15, %c0_16, %c1_17, %c0_18, %c0_19], %20 {strides = array<i32>} : memref<1x2x4x8x8xf32, #tpu.memory_space<vmem>>, vector<1x1x1x8x8xf32>,
    %21 = vector.extract_strided_slice %8 {offsets = [0, 8], sizes = [8, 8], strides = [1, 1]} : vector<8x32xf32> to vector<8x8xf32>
    %c0_20 = arith.constant 0 : index
    %c1_21 = arith.constant 1 : index
    %c1_22 = arith.constant 1 : index
    %c0_23 = arith.constant 0 : index
    %c0_24 = arith.constant 0 : index
    %22 = vector.load %arg5[%c0_20, %c1_21, %c1_22, %c0_23, %c0_24] : memref<1x2x4x8x8xf32, #tpu.memory_space<vmem>>, vector<1x1x1x8x8xf32>
    %23 = vector.shape_cast %22 : vector<1x1x1x8x8xf32> to vector<8x8xf32>
    %24 = vector.shape_cast %21 : vector<8x8xf32> to vector<1x1x1x8x8xf32>
    tpu.vector_store %arg5[%c0_20, %c1_21, %c1_22, %c0_23, %c0_24], %24 {strides = array<i32>} : memref<1x2x4x8x8xf32, #tpu.memory_space<vmem>>, vector<1x1x1x8x8xf32>,
    %25 = vector.extract_strided_slice %4 {offsets = [0, 16], sizes = [8, 8], strides = [1, 1]} : vector<8x32xf32> to vector<8x8xf32>
    %c0_25 = arith.constant 0 : index
    %c0_26 = arith.constant 0 : index
    %c2 = arith.constant 2 : index
    %c0_27 = arith.constant 0 : index
    %c0_28 = arith.constant 0 : index
    %26 = vector.load %arg5[%c0_25, %c0_26, %c2, %c0_27, %c0_28] : memref<1x2x4x8x8xf32, #tpu.memory_space<vmem>>, vector<1x1x1x8x8xf32>
    %27 = vector.shape_cast %26 : vector<1x1x1x8x8xf32> to vector<8x8xf32>
    %28 = vector.shape_cast %25 : vector<8x8xf32> to vector<1x1x1x8x8xf32>
    tpu.vector_store %arg5[%c0_25, %c0_26, %c2, %c0_27, %c0_28], %28 {strides = array<i32>} : memref<1x2x4x8x8xf32, #tpu.memory_space<vmem>>, vector<1x1x1x8x8xf32>,
    %29 = vector.extract_strided_slice %8 {offsets = [0, 16], sizes = [8, 8], strides = [1, 1]} : vector<8x32xf32> to vector<8x8xf32>
    %c0_29 = arith.constant 0 : index
    %c1_30 = arith.constant 1 : index
    %c2_31 = arith.constant 2 : index
    %c0_32 = arith.constant 0 : index
    %c0_33 = arith.constant 0 : index
    %30 = vector.load %arg5[%c0_29, %c1_30, %c2_31, %c0_32, %c0_33] : memref<1x2x4x8x8xf32, #tpu.memory_space<vmem>>, vector<1x1x1x8x8xf32>
    %31 = vector.shape_cast %30 : vector<1x1x1x8x8xf32> to vector<8x8xf32>
    %32 = vector.shape_cast %29 : vector<8x8xf32> to vector<1x1x1x8x8xf32>
    tpu.vector_store %arg5[%c0_29, %c1_30, %c2_31, %c0_32, %c0_33], %32 {strides = array<i32>} : memref<1x2x4x8x8xf32, #tpu.memory_space<vmem>>, vector<1x1x1x8x8xf32>,
    %33 = vector.extract_strided_slice %4 {offsets = [0, 24], sizes = [8, 8], strides = [1, 1]} : vector<8x32xf32> to vector<8x8xf32>
    %c0_34 = arith.constant 0 : index
    %c0_35 = arith.constant 0 : index
    %c3 = arith.constant 3 : index
    %c0_36 = arith.constant 0 : index
    %c0_37 = arith.constant 0 : index
    %34 = vector.load %arg5[%c0_34, %c0_35, %c3, %c0_36, %c0_37] : memref<1x2x4x8x8xf32, #tpu.memory_space<vmem>>, vector<1x1x1x8x8xf32>
    %35 = vector.shape_cast %34 : vector<1x1x1x8x8xf32> to vector<8x8xf32>
    %36 = vector.shape_cast %33 : vector<8x8xf32> to vector<1x1x1x8x8xf32>
    tpu.vector_store %arg5[%c0_34, %c0_35, %c3, %c0_36, %c0_37], %36 {strides = array<i32>} : memref<1x2x4x8x8xf32, #tpu.memory_space<vmem>>, vector<1x1x1x8x8xf32>,
    %37 = vector.extract_strided_slice %8 {offsets = [0, 24], sizes = [8, 8], strides = [1, 1]} : vector<8x32xf32> to vector<8x8xf32>
    %c0_38 = arith.constant 0 : index
    %c1_39 = arith.constant 1 : index
    %c3_40 = arith.constant 3 : index
    %c0_41 = arith.constant 0 : index
    %c0_42 = arith.constant 0 : index
    %38 = vector.load %arg5[%c0_38, %c1_39, %c3_40, %c0_41, %c0_42] : memref<1x2x4x8x8xf32, #tpu.memory_space<vmem>>, vector<1x1x1x8x8xf32>
    %39 = vector.shape_cast %38 : vector<1x1x1x8x8xf32> to vector<8x8xf32>
    %40 = vector.shape_cast %37 : vector<8x8xf32> to vector<1x1x1x8x8xf32>
    tpu.vector_store %arg5[%c0_38, %c1_39, %c3_40, %c0_41, %c0_42], %40 {strides = array<i32>} : memref<1x2x4x8x8xf32, #tpu.memory_space<vmem>>, vector<1x1x1x8x8xf32>,
    return
  }
  func.func @transform_0(%arg0: i32, %arg1: i32) -> (i32, i32, i32) {
    %c0_i32 = arith.constant 0 : i32
    %c0_i32_0 = arith.constant 0 : i32
    return %arg0, %arg1, %c0_i32 : i32, i32, i32
  }
  func.func @transform_1(%arg0: i32, %arg1: i32) -> (i32, i32) {
    %c0_i32 = arith.constant 0 : i32
    %c0_i32_0 = arith.constant 0 : i32
    %c0_i32_1 = arith.constant 0 : i32
    return %c0_i32, %c0_i32_0 : i32, i32
  }
  func.func @transform_2(%arg0: i32, %arg1: i32) -> (i32, i32) {
    %c0_i32 = arith.constant 0 : i32
    %c0_i32_0 = arith.constant 0 : i32
    %c0_i32_1 = arith.constant 0 : i32
    return %c0_i32, %c0_i32_0 : i32, i32
  }
  func.func @transform_3(%arg0: i32, %arg1: i32) -> (i32, i32, i32, i32, i32) {
    %c0_i32 = arith.constant 0 : i32
    %c0_i32_0 = arith.constant 0 : i32
    %c0_i32_1 = arith.constant 0 : i32
    %c0_i32_2 = arith.constant 0 : i32
    return %arg0, %c0_i32, %c0_i32_0, %arg1, %c0_i32_1 : i32, i32, i32, i32, i32
  }
}

module attributes {stable_mosaic.version = 11 : i64} {
  func.func @_kv_proj_kernel(%arg0: i32, %arg1: i32, %arg2: memref<1x8x32xf32, #tpu.memory_space<vmem>>, %arg3: memref<32x64xf32, #tpu.memory_space<vmem>>, %arg4: memref<1x32xf32, #tpu.memory_space<vmem>>, %arg5: memref<1x2x4x8x8xf32, #tpu.memory_space<vmem>>) attributes {dimension_semantics = [#tpu.dimension_semantics<parallel>, #tpu.dimension_semantics<parallel>], iteration_bounds = array<i64: 2, 1>, scalar_prefetch = 0 : i64, scratch_operands = 0 : i64, tpu.core_type = #tpu.core_type<tc>, window_params = [{transform_indices = @transform_0, window_bounds = array<i64: 1, 8, 32>}, {pipeline_mode = #tpu.pipeline_mode<synchronous>, transform_indices = @transform_1, window_bounds = array<i64: 32, 64>}, {pipeline_mode = #tpu.pipeline_mode<synchronous>, transform_indices = @transform_2, window_bounds = array<i64: 1, 32>}, {transform_indices = @transform_3, window_bounds = array<i64: 1, 2, 4, 8, 8>}]} {
    %c0 = arith.constant 0 : index
    %c0_0 = arith.constant 0 : index
    %c0_1 = arith.constant 0 : index
    %0 = vector.load %arg2[%c0, %c0_0, %c0_1] : memref<1x8x32xf32, #tpu.memory_space<vmem>>, vector<1x8x32xf32>
    %1 = vector.shape_cast %0 : vector<1x8x32xf32> to vector<8x32xf32>
    %c0_2 = arith.constant 0 : index
    %c0_3 = arith.constant 0 : index
    %2 = vector.load %arg3[%c0_2, %c0_3] : memref<32x64xf32, #tpu.memory_space<vmem>>, vector<32x64xf32>
    %cst = arith.constant dense<0.000000e+00> : vector<8x64xf32>
    %3 = tpu.matmul %1, %2, %cst {dimension_numbers = #tpu.dot_dimension_numbers<[1], [0], [0], [1], [0, 0, 1, 1], [], []>} : vector<8x32xf32>, vector<32x64xf32>, vector<8x64xf32> -> vector<8x64xf32>
    %4 = vector.extract_strided_slice %3 {offsets = [0, 0], sizes = [8, 32], strides = [1, 1]} : vector<8x64xf32> to vector<8x32xf32>
    %5 = vector.extract_strided_slice %3 {offsets = [0, 32], sizes = [8, 32], strides = [1, 1]} : vector<8x64xf32> to vector<8x32xf32>
    %c0_4 = arith.constant 0 : index
    %c0_5 = arith.constant 0 : index
    %6 = vector.load %arg4[%c0_4, %c0_5] : memref<1x32xf32, #tpu.memory_space<vmem>>, vector<1x32xf32>
    %7 = vector.broadcast %6 : vector<1x32xf32> to vector<8x32xf32>
    %8 = arith.addf %5, %7 : vector<8x32xf32>
    %9 = vector.extract_strided_slice %4 {offsets = [0, 0], sizes = [8, 8], strides = [1, 1]} : vector<8x32xf32> to vector<8x8xf32>
    %c0_6 = arith.constant 0 : index
    %c0_7 = arith.constant 0 : index
    %c0_8 = arith.constant 0 : index
    %c0_9 = arith.constant 0 : index
    %c0_10 = arith.constant 0 : index
    %10 = vector.load %arg5[%c0_6, %c0_7, %c0_8, %c0_9, %c0_10] : memref<1x2x4x8x8xf32, #tpu.memory_space<vmem>>, vector<1x1x1x8x8xf32>
    %11 = vector.shape_cast %10 : vector<1x1x1x8x8xf32> to vector<8x8xf32>
    %12 = vector.shape_cast %9 : vector<8x8xf32> to vector<1x1x1x8x8xf32>
    tpu.vector_store %arg5[%c0_6, %c0_7, %c0_8, %c0_9, %c0_10], %12 {strides = array<i32>} : memref<1x2x4x8x8xf32, #tpu.memory_space<vmem>>, vector<1x1x1x8x8xf32>,
    %13 = vector.extract_strided_slice %8 {offsets = [0, 0], sizes = [8, 8], strides = [1, 1]} : vector<8x32xf32> to vector<8x8xf32>
    %c0_11 = arith.constant 0 : index
    %c1 = arith.constant 1 : index
    %c0_12 = arith.constant 0 : index
    %c0_13 = arith.constant 0 : index
    %c0_14 = arith.constant 0 : index
    %14 = vector.load %arg5[%c0_11, %c1, %c0_12, %c0_13, %c0_14] : memref<1x2x4x8x8xf32, #tpu.memory_space<vmem>>, vector<1x1x1x8x8xf32>
    %15 = vector.shape_cast %14 : vector<1x1x1x8x8xf32> to vector<8x8xf32>
    %16 = vector.shape_cast %13 : vector<8x8xf32> to vector<1x1x1x8x8xf32>
    tpu.vector_store %arg5[%c0_11, %c1, %c0_12, %c0_13, %c0_14], %16 {strides = array<i32>} : memref<1x2x4x8x8xf32, #tpu.memory_space<vmem>>, vector<1x1x1x8x8xf32>,
    %17 = vector.extract_strided_slice %4 {offsets = [0, 8], sizes = [8, 8], strides = [1, 1]} : vector<8x32xf32> to vector<8x8xf32>
    %c0_15 = arith.constant 0 : index
    %c0_16 = arith.constant 0 : index
    %c1_17 = arith.constant 1 : index
    %c0_18 = arith.constant 0 : index
    %c0_19 = arith.constant 0 : index
    %18 = vector.load %arg5[%c0_15, %c0_16, %c1_17, %c0_18, %c0_19] : memref<1x2x4x8x8xf32, #tpu.memory_space<vmem>>, vector<1x1x1x8x8xf32>
    %19 = vector.shape_cast %18 : vector<1x1x1x8x8xf32> to vector<8x8xf32>
    %20 = vector.shape_cast %17 : vector<8x8xf32> to vector<1x1x1x8x8xf32>
    tpu.vector_store %arg5[%c0_15, %c0_16, %c1_17, %c0_18, %c0_19], %20 {strides = array<i32>} : memref<1x2x4x8x8xf32, #tpu.memory_space<vmem>>, vector<1x1x1x8x8xf32>,
    %21 = vector.extract_strided_slice %8 {offsets = [0, 8], sizes = [8, 8], strides = [1, 1]} : vector<8x32xf32> to vector<8x8xf32>
    %c0_20 = arith.constant 0 : index
    %c1_21 = arith.constant 1 : index
    %c1_22 = arith.constant 1 : index
    %c0_23 = arith.constant 0 : index
    %c0_24 = arith.constant 0 : index
    %22 = vector.load %arg5[%c0_20, %c1_21, %c1_22, %c0_23, %c0_24] : memref<1x2x4x8x8xf32, #tpu.memory_space<vmem>>, vector<1x1x1x8x8xf32>
    %23 = vector.shape_cast %22 : vector<1x1x1x8x8xf32> to vector<8x8xf32>
    %24 = vector.shape_cast %21 : vector<8x8xf32> to vector<1x1x1x8x8xf32>
    tpu.vector_store %arg5[%c0_20, %c1_21, %c1_22, %c0_23, %c0_24], %24 {strides = array<i32>} : memref<1x2x4x8x8xf32, #tpu.memory_space<vmem>>, vector<1x1x1x8x8xf32>,
    %25 = vector.extract_strided_slice %4 {offsets = [0, 16], sizes = [8, 8], strides = [1, 1]} : vector<8x32xf32> to vector<8x8xf32>
    %c0_25 = arith.constant 0 : index
    %c0_26 = arith.constant 0 : index
    %c2 = arith.constant 2 : index
    %c0_27 = arith.constant 0 : index
    %c0_28 = arith.constant 0 : index
    %26 = vector.load %arg5[%c0_25, %c0_26, %c2, %c0_27, %c0_28] : memref<1x2x4x8x8xf32, #tpu.memory_space<vmem>>, vector<1x1x1x8x8xf32>
    %27 = vector.shape_cast %26 : vector<1x1x1x8x8xf32> to vector<8x8xf32>
    %28 = vector.shape_cast %25 : vector<8x8xf32> to vector<1x1x1x8x8xf32>
    tpu.vector_store %arg5[%c0_25, %c0_26, %c2, %c0_27, %c0_28], %28 {strides = array<i32>} : memref<1x2x4x8x8xf32, #tpu.memory_space<vmem>>, vector<1x1x1x8x8xf32>,
    %29 = vector.extract_strided_slice %8 {offsets = [0, 16], sizes = [8, 8], strides = [1, 1]} : vector<8x32xf32> to vector<8x8xf32>
    %c0_29 = arith.constant 0 : index
    %c1_30 = arith.constant 1 : index
    %c2_31 = arith.constant 2 : index
    %c0_32 = arith.constant 0 : index
    %c0_33 = arith.constant 0 : index
    %30 = vector.load %arg5[%c0_29, %c1_30, %c2_31, %c0_32, %c0_33] : memref<1x2x4x8x8xf32, #tpu.memory_space<vmem>>, vector<1x1x1x8x8xf32>
    %31 = vector.shape_cast %30 : vector<1x1x1x8x8xf32> to vector<8x8xf32>
    %32 = vector.shape_cast %29 : vector<8x8xf32> to vector<1x1x1x8x8xf32>
    tpu.vector_store %arg5[%c0_29, %c1_30, %c2_31, %c0_32, %c0_33], %32 {strides = array<i32>} : memref<1x2x4x8x8xf32, #tpu.memory_space<vmem>>, vector<1x1x1x8x8xf32>,
    %33 = vector.extract_strided_slice %4 {offsets = [0, 24], sizes = [8, 8], strides = [1, 1]} : vector<8x32xf32> to vector<8x8xf32>
    %c0_34 = arith.constant 0 : index
    %c0_35 = arith.constant 0 : index
    %c3 = arith.constant 3 : index
    %c0_36 = arith.constant 0 : index
    %c0_37 = arith.constant 0 : index
    %34 = vector.load %arg5[%c0_34, %c0_35, %c3, %c0_36, %c0_37] : memref<1x2x4x8x8xf32, #tpu.memory_space<vmem>>, vector<1x1x1x8x8xf32>
    %35 = vector.shape_cast %34 : vector<1x1x1x8x8xf32> to vector<8x8xf32>
    %36 = vector.shape_cast %33 : vector<8x8xf32> to vector<1x1x1x8x8xf32>
    tpu.vector_store %arg5[%c0_34, %c0_35, %c3, %c0_36, %c0_37], %36 {strides = array<i32>} : memref<1x2x4x8x8xf32, #tpu.memory_space<vmem>>, vector<1x1x1x8x8xf32>,
    %37 = vector.extract_strided_slice %8 {offsets = [0, 24], sizes = [8, 8], strides = [1, 1]} : vector<8x32xf32> to vector<8x8xf32>
    %c0_38 = arith.constant 0 : index
    %c1_39 = arith.constant 1 : index
    %c3_40 = arith.constant 3 : index
    %c0_41 = arith.constant 0 : index
    %c0_42 = arith.constant 0 : index
    %38 = vector.load %arg5[%c0_38, %c1_39, %c3_40, %c0_41, %c0_42] : memref<1x2x4x8x8xf32, #tpu.memory_space<vmem>>, vector<1x1x1x8x8xf32>
    %39 = vector.shape_cast %38 : vector<1x1x1x8x8xf32> to vector<8x8xf32>
    %40 = vector.shape_cast %37 : vector<8x8xf32> to vector<1x1x1x8x8xf32>
    tpu.vector_store %arg5[%c0_38, %c1_39, %c3_40, %c0_41, %c0_42], %40 {strides = array<i32>} : memref<1x2x4x8x8xf32, #tpu.memory_space<vmem>>, vector<1x1x1x8x8xf32>,
    return
  }
  func.func @transform_0(%arg0: i32, %arg1: i32) -> (i32, i32, i32) {
    %c0_i32 = arith.constant 0 : i32
    %c0_i32_0 = arith.constant 0 : i32
    return %arg0, %arg1, %c0_i32 : i32, i32, i32
  }
  func.func @transform_1(%arg0: i32, %arg1: i32) -> (i32, i32) {
    %c0_i32 = arith.constant 0 : i32
    %c0_i32_0 = arith.constant 0 : i32
    %c0_i32_1 = arith.constant 0 : i32
    return %c0_i32, %c0_i32_0 : i32, i32
  }
  func.func @transform_2(%arg0: i32, %arg1: i32) -> (i32, i32) {
    %c0_i32 = arith.constant 0 : i32
    %c0_i32_0 = arith.constant 0 : i32
    %c0_i32_1 = arith.constant 0 : i32
    return %c0_i32, %c0_i32_0 : i32, i32
  }
  func.func @transform_3(%arg0: i32, %arg1: i32) -> (i32, i32, i32, i32, i32) {
    %c0_i32 = arith.constant 0 : i32
    %c0_i32_0 = arith.constant 0 : i32
    %c0_i32_1 = arith.constant 0 : i32
    %c0_i32_2 = arith.constant 0 : i32
    return %arg0, %c0_i32, %c0_i32_0, %arg1, %c0_i32_1 : i32, i32, i32, i32, i32
  }
}

</mosaic_0001>

<llo_original>
// kernel: tpu_custom_call.1
$region0: #{tpu_custom_call.1}
  #allocation0 [shape = 'u32[]', space=smem, size = 0x4, offset = 0x4, fixed_abs, tag = 'smem constant byte address 0x4 - core index']
  #allocation1 [shape = 'u32[72,128]{1,0:T(1,128)}', space=vmem, size = 0x9000, scoped, tag = 'internal scratch']
  %s0 = inlined_call_operand.hbm [shape: f32[2,8,32], index: 0, kind: input, shape index: {}]
  %s1 = inlined_call_operand.hbm [shape: f32[32,64], index: 1, kind: input, shape index: {}]
  %s2 = inlined_call_operand.vmem [shape: f32[1,32], index: 2, kind: input, shape index: {}]
  %s3 = inlined_call_operand.hbm [shape: f32[2,2,4,8,8], index: 3, kind: output, shape index: {}]
  %s4 = sld [smem:[#allocation0]]
  $region53: #{tpu_custom_call.1} parent=0
    _
  %s6 = ssub.s32 1, %s4
  %s7 = scalar_select 0, %s6, %s4
  $region1: #{tpu_custom_call.1} parent=0
    #allocation2 [shape = 'u8[8192]{0}', space=vmem, size = 0x2000, scoped, tag = 'input window, operand 0']
    #allocation3 [shape = 's32[2]{0}', space=sflag, size = 0x8, scoped, tag = 'scoped memory for tpu_custom_call.1']
    #allocation4 [shape = 's32[2]{0}', space=sflag, size = 0x8, scoped, tag = 'scoped memory for tpu_custom_call.1']
    #allocation5 [shape = 'u8[16384]{0}', space=vmem, size = 0x4000, scoped, tag = 'input window, operand 1, single buffered']
    #allocation6 [shape = 's32[1]{0}', space=sflag, size = 0x4, scoped, tag = 'scoped memory for tpu_custom_call.1']
    #allocation7 [shape = 'u8[65536]{0}', space=vmem, size = 0x10000, scoped, tag = 'output window, operand 0']
    %8 = vsyncpa [#allocation3], 0
    %s9 = scalar_lea.sflag [#allocation3], 1
    %10 = vsyncpa %s9, 0
    %11 = vsyncpa [#allocation6], 0
    %12 = vsyncpa [#allocation4], 0
    %s13 = scalar_lea.sflag [#allocation4], 1
    %14 = vsyncpa %s13, 0
    loop: start=0, step=1, limit=4
    $region2: #{tpu_custom_call.1} parent=1 // loop_pre_header
      _
    $region3: #{tpu_custom_call.1} parent=1 // loop_header
      %s16 = sphi 0, %s20
      %p17 = scmp.ge.s32.totalorder %s16, 4
      %s23 = sphi 0, %s35
      %s24 = sphi 0, %s31
      %s25 = sphi 0, %s23
      %s26 = sphi 0, %s24
      %s27 = sphi 0, %s25
      %s28 = sphi 0, %s26
      %s40 = sphi 0, %s42
      %s43 = sphi 0, %s40
      %s44 = sphi 0, %s43
      %s60 = sphi 0, %s44
      %s64 = sphi 0, %s64
      %s66 = sphi 0, %s64
      %s67 = sphi 0, %s66
      %s81 = sphi 0, %s67
      %s85 = sphi 0, %s85
      %s87 = sphi 0, %s85
      %s88 = sphi 0, %s87
      %s102 = sphi 0, %s88
      %s110 = sphi 0, %s112
      %s113 = sphi 0, %s110
      %s114 = sphi 0, %s113
      %s130 = sphi 0, %s114
    $region4: #{tpu_custom_call.1} parent=1 // loop_header_branch
      %19 = sbr.rel (%p17) target = $region8
    $region5: #{tpu_custom_call.1} parent=1 // loop_body
      %s21 = ssub.s32 %s16, 1
      %s22 = ssub.s32 %s16, 2
      %s29 = sadd.s32 1, %s24
      %p30 = scmp.ge.s32.totalorder %s29, 1
      %s31 = scalar_select %p30, 0, %s29
      %s32 = sadd.s32 1, %s23
      %s33 = scalar_select %p30, %s32, %s23
      %p34 = scmp.ge.s32.totalorder %s33, 2
      %s35 = scalar_select %p34, 0, %s33
      %s36 = ssub.s32 %s23, %s35
      %s37 = ssub.s32 %s24, %s31
      %s38 = sor.u32 %s36, %s37
      %p39 = scmp.eq.s32.totalorder %s38, 0
      %s41 = sadd.s32 %s40, 1
      %s42 = scalar_select %p39, %s40, %s41
      %p45 = pneg %p39
      %p46 = scmp.eq.s32.totalorder %s16, 1
      %p47 = por %p45, %p46
      %p48 = scmp.ne.s32.totalorder %s40, %s43
      %p49 = scmp.eq.s32.totalorder %s16, 0
      %p50 = por %p48, %p49
      %p51 = scmp.ne.s32.totalorder %s40, %s43
      %p52 = scmp.eq.s32.totalorder %s21, 1
      %p53 = por %p51, %p52
      %p54 = scmp.ne.s32.totalorder %s43, %s44
      %p55 = scmp.eq.s32.totalorder %s21, 0
      %p56 = por %p54, %p55
      %p57 = scmp.ne.s32.totalorder %s43, %s44
      %p58 = scmp.eq.s32.totalorder %s22, 1
      %p59 = por %p57, %p58
      %p61 = scmp.ne.s32.totalorder %s44, %s60
      %p62 = scmp.eq.s32.totalorder %s22, 0
      %p63 = por %p61, %p62
      %s65 = sadd.s32 %s64, 1
      %p68 = scmp.eq.s32.totalorder %s16, 1
      %p69 = scmp.ne.s32.totalorder %s64, %s66
      %p70 = scmp.eq.s32.totalorder %s16, 0
      %p71 = por %p69, %p70
      %p72 = scmp.ne.s32.totalorder %s64, %s66
      %p73 = scmp.eq.s32.totalorder %s21, 1
      %p74 = por %p72, %p73
      %p75 = scmp.ne.s32.totalorder %s66, %s67
      %p76 = scmp.eq.s32.totalorder %s21, 0
      %p77 = por %p75, %p76
      %p78 = scmp.ne.s32.totalorder %s66, %s67
      %p79 = scmp.eq.s32.totalorder %s22, 1
      %p80 = por %p78, %p79
      %p82 = scmp.ne.s32.totalorder %s67, %s81
      %p83 = scmp.eq.s32.totalorder %s22, 0
      %p84 = por %p82, %p83
      %s86 = sadd.s32 %s85, 1
      %p89 = scmp.eq.s32.totalorder %s16, 1
      %p90 = scmp.ne.s32.totalorder %s85, %s87
      %p91 = scmp.eq.s32.totalorder %s16, 0
      %p92 = por %p90, %p91
      %p93 = scmp.ne.s32.totalorder %s85, %s87
      %p94 = scmp.eq.s32.totalorder %s21, 1
      %p95 = por %p93, %p94
      %p96 = scmp.ne.s32.totalorder %s87, %s88
      %p97 = scmp.eq.s32.totalorder %s21, 0
      %p98 = por %p96, %p97
      %p99 = scmp.ne.s32.totalorder %s87, %s88
      %p100 = scmp.eq.s32.totalorder %s22, 1
      %p101 = por %p99, %p100
      %p103 = scmp.ne.s32.totalorder %s88, %s102
      %p104 = scmp.eq.s32.totalorder %s22, 0
      %p105 = por %p103, %p104
      %s106 = ssub.s32 %s23, %s35
      %s107 = ssub.s32 %s24, %s31
      %s108 = sor.u32 %s106, %s107
      %p109 = scmp.eq.s32.totalorder %s108, 0
      %s111 = sadd.s32 %s110, 1
      %s112 = scalar_select %p109, %s110, %s111
      %p115 = pneg %p109
      %p116 = scmp.eq.s32.totalorder %s16, 1
      %p117 = por %p115, %p116
      %p118 = scmp.ne.s32.totalorder %s110, %s113
      %p119 = scmp.eq.s32.totalorder %s16, 0
      %p120 = por %p118, %p119
      %p121 = scmp.ne.s32.totalorder %s110, %s113
      %p122 = scmp.eq.s32.totalorder %s21, 1
      %p123 = por %p121, %p122
      %p124 = scmp.ne.s32.totalorder %s113, %s114
      %p125 = scmp.eq.s32.totalorder %s21, 0
      %p126 = por %p124, %p125
      %p127 = scmp.ne.s32.totalorder %s113, %s114
      %p128 = scmp.eq.s32.totalorder %s22, 1
      %p129 = por %p127, %p128
      %p131 = scmp.ne.s32.totalorder %s114, %s130
      %p132 = scmp.eq.s32.totalorder %s22, 0
      %p133 = por %p131, %p132
      %p134 = scmp.le.s32.totalorder 1, %s16
      %p135 = scmp.lt.s32.totalorder %s16, 3
      %p136 = pnand %p134, %p135
      %p137 = pneg %p136
      // Predicated region
      $region9: #{tpu_custom_call.1} parent=5 // pred_check
        _
      $region10: #{tpu_custom_call.1} parent=5 // pred_check_branch
        %139 = sbr.rel (%p136) target = $region12
      $region11: #{tpu_custom_call.1} parent=5 // pred_region
        %s140 = ssub.s32 %s16, 1
        // Predicated region
        $region13: #{tpu_custom_call.1} parent=11 // pred_check
          %p141 = pneg %p77
        $region14: #{tpu_custom_call.1} parent=11 // pred_check_branch
          %143 = sbr.rel (%p141) target = $region16
        $region15: #{tpu_custom_call.1} parent=11 // pred_region
          %145 = vsyncadd [#allocation6], 0
          %s146 = sshll.u32 %s1, 4
          %s147 = int_to_ptr.hbm [resolvable:$true] %s146
          %s148 = sshll.u32 [#allocation5], 4
          %s149 = int_to_ptr.vmem [resolvable:$true] %s148
          %154 = dma.hbm_to_vmem [thread:$0]  %s147, 512, %s149, [#allocation6], 128, 128, 8
        $region16: #{tpu_custom_call.1} parent=11 // pred_fallthru
          _
        // Predicated region
        $region17: #{tpu_custom_call.1} parent=11 // pred_check
          %p155 = pneg %p98
        $region18: #{tpu_custom_call.1} parent=11 // pred_check_branch
          %157 = sbr.rel (%p155) target = $region20
        $region19: #{tpu_custom_call.1} parent=11 // pred_region
          _
        $region20: #{tpu_custom_call.1} parent=11 // pred_fallthru
          _
      $region12: #{tpu_custom_call.1} parent=5 // pred_fallthru
        _
      %p158 = scmp.lt.s32.totalorder %s16, 2
      // Predicated region
      $region21: #{tpu_custom_call.1} parent=5 // pred_check
        %p159 = pneg %p158
      $region22: #{tpu_custom_call.1} parent=5 // pred_check_branch
        %161 = sbr.rel (%p159) target = $region24
      $region23: #{tpu_custom_call.1} parent=5 // pred_region
        // Predicated region
        $region25: #{tpu_custom_call.1} parent=23 // pred_check
          %p162 = pneg %p50
        $region26: #{tpu_custom_call.1} parent=23 // pred_check_branch
          %164 = sbr.rel (%p162) target = $region28
        $region27: #{tpu_custom_call.1} parent=23 // pred_region
          %s165 = sand.u32 %s40, 1
          %s166 = scalar_lea.sflag [#allocation3], %s165
          %s167 = sand.u32 %s40, 1
          %s168 = smul.addr %s167, 8
          %s169 = scalar_lea.vmem [#allocation2], %s168
          %171 = vsyncadd %s166, 0
          %s172 = sadd.s32 %s24, %s23
          %s173 = smul.addr %s172, 8
          %s174 = scalar_lea.hbm %s0, %s173
          %s176 = sshll.u32 %s174, 4
          %s177 = int_to_ptr.hbm [resolvable:$true] %s176
          %s178 = sshll.u32 %s169, 4
          %s179 = int_to_ptr.vmem [resolvable:$true] %s178
          %181 = dma.hbm_to_vmem [thread:$0]  %s177, 128, %s179, %s166
        $region28: #{tpu_custom_call.1} parent=23 // pred_fallthru
          _
      $region24: #{tpu_custom_call.1} parent=5 // pred_fallthru
        _
      %p182 = scmp.le.s32.totalorder 1, %s16
      %p183 = scmp.lt.s32.totalorder %s16, 3
      %p184 = pnand %p182, %p183
      %p185 = pneg %p184
      // Predicated region
      $region29: #{tpu_custom_call.1} parent=5 // pred_check
        _
      $region30: #{tpu_custom_call.1} parent=5 // pred_check_branch
        %187 = sbr.rel (%p184) target = $region32
      $region31: #{tpu_custom_call.1} parent=5 // pred_region
        %s188 = ssub.s32 %s16, 1
        %s189 = sand.u32 %s43, 1
        %s190 = scalar_lea.sflag [#allocation3], %s189
        %s191 = sand.u32 %s43, 1
        %s192 = smul.addr %s191, 8
        %s193 = scalar_lea.vmem [#allocation2], %s192
        // Predicated region
        $region33: #{tpu_custom_call.1} parent=31 // pred_check
          %p194 = pneg %p56
        $region34: #{tpu_custom_call.1} parent=31 // pred_check_branch
          %196 = sbr.rel (%p194) target = $region36
        $region35: #{tpu_custom_call.1} parent=31 // pred_region
          %198 = dma.done %s190, 128
        $region36: #{tpu_custom_call.1} parent=31 // pred_fallthru
          _
        // Predicated region
        $region37: #{tpu_custom_call.1} parent=31 // pred_check
          %p199 = pneg %p77
        $region38: #{tpu_custom_call.1} parent=31 // pred_check_branch
          %201 = sbr.rel (%p199) target = $region40
        $region39: #{tpu_custom_call.1} parent=31 // pred_region
          %203 = dma.done [#allocation6], 512
        $region40: #{tpu_custom_call.1} parent=31 // pred_fallthru
          _
        %s204 = sand.u32 %s43, 1
        %s205 = scalar_lea.sflag [#allocation3], %s204
        %s206 = sand.u32 %s43, 1
        %s207 = smul.addr %s206, 8
        %s208 = scalar_lea.vmem [#allocation2], %s207
        %p209 = pneg %p56
        %p210 = pneg %p53
        %p211 = pneg %p77
        %p212 = pneg %p74
        %p213 = pneg %p98
        %p214 = pneg %p95
        %p215 = pneg %p126
        %p216 = pneg %p123
        %s217 = sand.u32 %s113, 1
        %s218 = scalar_lea.sflag [#allocation4], %s217
        %s219 = sand.u32 %s113, 1
        %s220 = smul.addr %s219, 64
        %s221 = scalar_lea.vmem [#allocation7], %s220
        %v222 = vld [vmem:[%s193] sm:$0xff]
        %v223 = vld [vmem:[#allocation5] sm:$0xff]
        %v224 = vld [vmem:[#allocation5 + $0x8] sm:$0xff]
        %v225 = vld [vmem:[#allocation5 + $0x10] sm:$0xff]
        %v226 = vld [vmem:[#allocation5 + $0x18] sm:$0xff]
        %vm227 = vcmask 261120
        %v229 = vsel %vm227, %v222, 0
        %231 = vmatpush.msra.mxu0 0.0
        %232 = vmatpush.msra.mxu0 0.0
        %233 = vmatpush.msra.mxu0 0.0
        %234 = vmatpush.msra.mxu0 0.0
        %235 = vmatpush.msra.mxu0 0.0
        %236 = vmatpush.msra.mxu0 0.0
        %237 = vmatpush.msra.mxu0 0.0
        %238 = vmatpush.msra.mxu0 0.0
        %239 = vmatpush.msra.mxu0 0.0
        %240 = vmatpush.msra.mxu0 0.0
        %241 = vmatpush.msra.mxu0 0.0
        %242 = vmatpush.msra.mxu0 0.0
        %243 = vmatpush.msra.mxu0 %v226
        %244 = vmatpush.msra.mxu0 %v225
        %245 = vmatpush.msra.mxu0 %v224
        %246 = vmatpush.msra.mxu0 %v223
        %247 = vmatmul.f32.gmra.mxu0 %v229
        %v248 = vpop.f32.mrf.mxu0
        %v249 = vadd.f32 0.0, %v248
        %250 = vdwg.mxu0
        %v251 = vld [vmem:[%s2] sm:$0x1]
        %v253 = vperm.slane %v251, 0
        %254 = vrot.lane.b32.xlu0 %v253, 32
        %v255 = vpop.permute.xlu0 %254
        %v257 = vadd.f32 %v249, %v255
        %vm258 = vcmask 64512
        %259 = vst.msk [vmem:[%s221] sm:$0xff] %vm258, %v249
        %261 = vrot.lane.b32.xlu0 %v257, 96
        %v262 = vpop.permute.xlu0 %261
        %s264 = scalar_lea.vmem %s221, 32 [#allocation7]
        %265 = vst.msk [vmem:[%s264] sm:$0xff] %vm258, %v262
        %267 = vrot.lane.b32.xlu0 %v249, 120
        %v268 = vpop.permute.xlu0 %267
        %s270 = scalar_lea.vmem %s221, 8 [#allocation7]
        %271 = vst.msk [vmem:[%s270] sm:$0xff] %vm258, %v268
        %272 = vrot.lane.b32.xlu0 %v257, 88
        %v273 = vpop.permute.xlu0 %272
        %s275 = scalar_lea.vmem %s221, 40 [#allocation7]
        %276 = vst.msk [vmem:[%s275] sm:$0xff] %vm258, %v273
        %277 = vrot.lane.b32.xlu0 %v249, 112
        %v278 = vpop.permute.xlu0 %277
        %s280 = scalar_lea.vmem %s221, 16 [#allocation7]
        %281 = vst.msk [vmem:[%s280] sm:$0xff] %vm258, %v278
        %282 = vrot.lane.b32.xlu0 %v257, 80
        %v283 = vpop.permute.xlu0 %282
        %s285 = scalar_lea.vmem %s221, 48 [#allocation7]
        %286 = vst.msk [vmem:[%s285] sm:$0xff] %vm258, %v283
        %287 = vrot.lane.b32.xlu0 %v249, 104
        %v288 = vpop.permute.xlu0 %287
        %s290 = scalar_lea.vmem %s221, 24 [#allocation7]
        %291 = vst.msk [vmem:[%s290] sm:$0xff] %vm258, %v288
        %292 = vrot.lane.b32.xlu0 %v257, 72
        %v293 = vpop.permute.xlu0 %292
        %s295 = scalar_lea.vmem %s221, 56 [#allocation7]
        %296 = vst.msk [vmem:[%s295] sm:$0xff] %vm258, %v293
        %s297 = sand.u32 %s113, 1
        %s298 = scalar_lea.sflag [#allocation4], %s297
        %s299 = sand.u32 %s113, 1
        %s300 = smul.addr %s299, 64
        %s301 = scalar_lea.vmem [#allocation7], %s300
        // Predicated region
        $region41: #{tpu_custom_call.1} parent=31 // pred_check
          %p302 = pneg %p123
        $region42: #{tpu_custom_call.1} parent=31 // pred_check_branch
          %304 = sbr.rel (%p302) target = $region44
        $region43: #{tpu_custom_call.1} parent=31 // pred_region
          %306 = vsyncadd %s298, 0
          %s307 = smul.addr %s25, 8
          %s308 = sadd.s32 %s26, %s307
          %s309 = smul.addr %s308, 8
          %s310 = scalar_lea.hbm %s3, %s309
          %s311 = sshll.u32 %s301, 4
          %s312 = int_to_ptr.vmem [resolvable:$true] %s311
          %s313 = sshll.u32 %s310, 4
          %s314 = int_to_ptr.hbm [resolvable:$true] %s313
          %319 = dma.vmem_to_hbm [thread:$0]  %s312, 1024, %s314, %s298, 128, 128, 8
        $region44: #{tpu_custom_call.1} parent=31 // pred_fallthru
          _
      $region32: #{tpu_custom_call.1} parent=5 // pred_fallthru
        _
      %p320 = scmp.le.s32.totalorder 2, %s16
      // Predicated region
      $region45: #{tpu_custom_call.1} parent=5 // pred_check
        %p321 = pneg %p320
      $region46: #{tpu_custom_call.1} parent=5 // pred_check_branch
        %323 = sbr.rel (%p321) target = $region48
      $region47: #{tpu_custom_call.1} parent=5 // pred_region
        %s324 = ssub.s32 %s16, 2
        // Predicated region
        $region49: #{tpu_custom_call.1} parent=47 // pred_check
          %p325 = pneg %p129
        $region50: #{tpu_custom_call.1} parent=47 // pred_check_branch
          %327 = sbr.rel (%p325) target = $region52
        $region51: #{tpu_custom_call.1} parent=47 // pred_region
          %s328 = sand.u32 %s114, 1
          %s329 = scalar_lea.sflag [#allocation4], %s328
          %s330 = sand.u32 %s114, 1
          %s331 = smul.addr %s330, 64
          %s332 = scalar_lea.vmem [#allocation7], %s331
          %334 = dma.done %s329, 1024
        $region52: #{tpu_custom_call.1} parent=47 // pred_fallthru
          _
      $region48: #{tpu_custom_call.1} parent=5 // pred_fallthru
        _
    $region6: #{tpu_custom_call.1} parent=1 // loop_footer
      %s20 = sadd.s32 1, %s16
    $region7: #{tpu_custom_call.1} parent=1 // loop_footer_branch
      %15 = sbr.rel target = $region3
    $region8: #{tpu_custom_call.1} parent=1 // loop_exit
      _
    %335 = vsyncpa [#allocation3], 1
    %s336 = scalar_lea.sflag [#allocation3], 1
    %337 = vsyncpa %s336, 1
    %338 = vsyncpa [#allocation6], 1
    %339 = vsyncpa [#allocation4], 1
    %s340 = scalar_lea.sflag [#allocation4], 1
    %341 = vsyncpa %s340, 1

// kernel: tpu_custom_call.1
$region0: #{tpu_custom_call.1}
  #allocation0 [shape = 'u32[]', space=smem, size = 0x4, offset = 0x4, fixed_abs, tag = 'smem constant byte address 0x4 - core index']
  #allocation1 [shape = 'u32[72,128]{1,0:T(1,128)}', space=vmem, size = 0x9000, scoped, tag = 'internal scratch']
  %s0 = inlined_call_operand.hbm [shape: f32[2,8,32], index: 0, kind: input, shape index: {}]
  %s1 = inlined_call_operand.hbm [shape: f32[32,64], index: 1, kind: input, shape index: {}]
  %s2 = inlined_call_operand.vmem [shape: f32[1,32], index: 2, kind: input, shape index: {}]
  %s3 = inlined_call_operand.hbm [shape: f32[2,2,4,8,8], index: 3, kind: output, shape index: {}]
  %s4 = sld [smem:[#allocation0]]
  $region53: #{tpu_custom_call.1} parent=0
    _
  %s6 = ssub.s32 1, %s4
  %s7 = scalar_select 0, %s6, %s4
  $region1: #{tpu_custom_call.1} parent=0
    #allocation2 [shape = 'u8[8192]{0}', space=vmem, size = 0x2000, scoped, tag = 'input window, operand 0']
    #allocation3 [shape = 's32[2]{0}', space=sflag, size = 0x8, scoped, tag = 'scoped memory for tpu_custom_call.1']
    #allocation4 [shape = 's32[2]{0}', space=sflag, size = 0x8, scoped, tag = 'scoped memory for tpu_custom_call.1']
    #allocation5 [shape = 'u8[16384]{0}', space=vmem, size = 0x4000, scoped, tag = 'input window, operand 1, single buffered']
    #allocation6 [shape = 's32[1]{0}', space=sflag, size = 0x4, scoped, tag = 'scoped memory for tpu_custom_call.1']
    #allocation7 [shape = 'u8[65536]{0}', space=vmem, size = 0x10000, scoped, tag = 'output window, operand 0']
    %8 = vsyncpa [#allocation3], 0
    %s9 = scalar_lea.sflag [#allocation3], 1
    %10 = vsyncpa %s9, 0
    %11 = vsyncpa [#allocation6], 0
    %12 = vsyncpa [#allocation4], 0
    %s13 = scalar_lea.sflag [#allocation4], 1
    %14 = vsyncpa %s13, 0
    loop: start=0, step=1, limit=4
    $region2: #{tpu_custom_call.1} parent=1 // loop_pre_header
      _
    $region3: #{tpu_custom_call.1} parent=1 // loop_header
      %s16 = sphi 0, %s20
      %p17 = scmp.ge.s32.totalorder %s16, 4
      %s23 = sphi 0, %s35
      %s24 = sphi 0, %s31
      %s25 = sphi 0, %s23
      %s26 = sphi 0, %s24
      %s27 = sphi 0, %s25
      %s28 = sphi 0, %s26
      %s40 = sphi 0, %s42
      %s43 = sphi 0, %s40
      %s44 = sphi 0, %s43
      %s60 = sphi 0, %s44
      %s64 = sphi 0, %s64
      %s66 = sphi 0, %s64
      %s67 = sphi 0, %s66
      %s81 = sphi 0, %s67
      %s85 = sphi 0, %s85
      %s87 = sphi 0, %s85
      %s88 = sphi 0, %s87
      %s102 = sphi 0, %s88
      %s110 = sphi 0, %s112
      %s113 = sphi 0, %s110
      %s114 = sphi 0, %s113
      %s130 = sphi 0, %s114
    $region4: #{tpu_custom_call.1} parent=1 // loop_header_branch
      %19 = sbr.rel (%p17) target = $region8
    $region5: #{tpu_custom_call.1} parent=1 // loop_body
      %s21 = ssub.s32 %s16, 1
      %s22 = ssub.s32 %s16, 2
      %s29 = sadd.s32 1, %s24
      %p30 = scmp.ge.s32.totalorder %s29, 1
      %s31 = scalar_select %p30, 0, %s29
      %s32 = sadd.s32 1, %s23
      %s33 = scalar_select %p30, %s32, %s23
      %p34 = scmp.ge.s32.totalorder %s33, 2
      %s35 = scalar_select %p34, 0, %s33
      %s36 = ssub.s32 %s23, %s35
      %s37 = ssub.s32 %s24, %s31
      %s38 = sor.u32 %s36, %s37
      %p39 = scmp.eq.s32.totalorder %s38, 0
      %s41 = sadd.s32 %s40, 1
      %s42 = scalar_select %p39, %s40, %s41
      %p45 = pneg %p39
      %p46 = scmp.eq.s32.totalorder %s16, 1
      %p47 = por %p45, %p46
      %p48 = scmp.ne.s32.totalorder %s40, %s43
      %p49 = scmp.eq.s32.totalorder %s16, 0
      %p50 = por %p48, %p49
      %p51 = scmp.ne.s32.totalorder %s40, %s43
      %p52 = scmp.eq.s32.totalorder %s21, 1
      %p53 = por %p51, %p52
      %p54 = scmp.ne.s32.totalorder %s43, %s44
      %p55 = scmp.eq.s32.totalorder %s21, 0
      %p56 = por %p54, %p55
      %p57 = scmp.ne.s32.totalorder %s43, %s44
      %p58 = scmp.eq.s32.totalorder %s22, 1
      %p59 = por %p57, %p58
      %p61 = scmp.ne.s32.totalorder %s44, %s60
      %p62 = scmp.eq.s32.totalorder %s22, 0
      %p63 = por %p61, %p62
      %s65 = sadd.s32 %s64, 1
      %p68 = scmp.eq.s32.totalorder %s16, 1
      %p69 = scmp.ne.s32.totalorder %s64, %s66
      %p70 = scmp.eq.s32.totalorder %s16, 0
      %p71 = por %p69, %p70
      %p72 = scmp.ne.s32.totalorder %s64, %s66
      %p73 = scmp.eq.s32.totalorder %s21, 1
      %p74 = por %p72, %p73
      %p75 = scmp.ne.s32.totalorder %s66, %s67
      %p76 = scmp.eq.s32.totalorder %s21, 0
      %p77 = por %p75, %p76
      %p78 = scmp.ne.s32.totalorder %s66, %s67
      %p79 = scmp.eq.s32.totalorder %s22, 1
      %p80 = por %p78, %p79
      %p82 = scmp.ne.s32.totalorder %s67, %s81
      %p83 = scmp.eq.s32.totalorder %s22, 0
      %p84 = por %p82, %p83
      %s86 = sadd.s32 %s85, 1
      %p89 = scmp.eq.s32.totalorder %s16, 1
      %p90 = scmp.ne.s32.totalorder %s85, %s87
      %p91 = scmp.eq.s32.totalorder %s16, 0
      %p92 = por %p90, %p91
      %p93 = scmp.ne.s32.totalorder %s85, %s87
      %p94 = scmp.eq.s32.totalorder %s21, 1
      %p95 = por %p93, %p94
      %p96 = scmp.ne.s32.totalorder %s87, %s88
      %p97 = scmp.eq.s32.totalorder %s21, 0
      %p98 = por %p96, %p97
      %p99 = scmp.ne.s32.totalorder %s87, %s88
      %p100 = scmp.eq.s32.totalorder %s22, 1
      %p101 = por %p99, %p100
      %p103 = scmp.ne.s32.totalorder %s88, %s102
      %p104 = scmp.eq.s32.totalorder %s22, 0
      %p105 = por %p103, %p104
      %s106 = ssub.s32 %s23, %s35
      %s107 = ssub.s32 %s24, %s31
      %s108 = sor.u32 %s106, %s107
      %p109 = scmp.eq.s32.totalorder %s108, 0
      %s111 = sadd.s32 %s110, 1
      %s112 = scalar_select %p109, %s110, %s111
      %p115 = pneg %p109
      %p116 = scmp.eq.s32.totalorder %s16, 1
      %p117 = por %p115, %p116
      %p118 = scmp.ne.s32.totalorder %s110, %s113
      %p119 = scmp.eq.s32.totalorder %s16, 0
      %p120 = por %p118, %p119
      %p121 = scmp.ne.s32.totalorder %s110, %s113
      %p122 = scmp.eq.s32.totalorder %s21, 1
      %p123 = por %p121, %p122
      %p124 = scmp.ne.s32.totalorder %s113, %s114
      %p125 = scmp.eq.s32.totalorder %s21, 0
      %p126 = por %p124, %p125
      %p127 = scmp.ne.s32.totalorder %s113, %s114
      %p128 = scmp.eq.s32.totalorder %s22, 1
      %p129 = por %p127, %p128
      %p131 = scmp.ne.s32.totalorder %s114, %s130
      %p132 = scmp.eq.s32.totalorder %s22, 0
      %p133 = por %p131, %p132
      %p134 = scmp.le.s32.totalorder 1, %s16
      %p135 = scmp.lt.s32.totalorder %s16, 3
      %p136 = pnand %p134, %p135
      %p137 = pneg %p136
      // Predicated region
      $region9: #{tpu_custom_call.1} parent=5 // pred_check
        _
      $region10: #{tpu_custom_call.1} parent=5 // pred_check_branch
        %139 = sbr.rel (%p136) target = $region12
      $region11: #{tpu_custom_call.1} parent=5 // pred_region
        %s140 = ssub.s32 %s16, 1
        // Predicated region
        $region13: #{tpu_custom_call.1} parent=11 // pred_check
          %p141 = pneg %p77
        $region14: #{tpu_custom_call.1} parent=11 // pred_check_branch
          %143 = sbr.rel (%p141) target = $region16
        $region15: #{tpu_custom_call.1} parent=11 // pred_region
          %145 = vsyncadd [#allocation6], 0
          %s146 = sshll.u32 %s1, 4
          %s147 = int_to_ptr.hbm [resolvable:$true] %s146
          %s148 = sshll.u32 [#allocation5], 4
          %s149 = int_to_ptr.vmem [resolvable:$true] %s148
          %154 = dma.hbm_to_vmem [thread:$0]  %s147, 512, %s149, [#allocation6], 128, 128, 8
        $region16: #{tpu_custom_call.1} parent=11 // pred_fallthru
          _
        // Predicated region
        $region17: #{tpu_custom_call.1} parent=11 // pred_check
          %p155 = pneg %p98
        $region18: #{tpu_custom_call.1} parent=11 // pred_check_branch
          %157 = sbr.rel (%p155) target = $region20
        $region19: #{tpu_custom_call.1} parent=11 // pred_region
          _
        $region20: #{tpu_custom_call.1} parent=11 // pred_fallthru
          _
      $region12: #{tpu_custom_call.1} parent=5 // pred_fallthru
        _
      %p158 = scmp.lt.s32.totalorder %s16, 2
      // Predicated region
      $region21: #{tpu_custom_call.1} parent=5 // pred_check
        %p159 = pneg %p158
      $region22: #{tpu_custom_call.1} parent=5 // pred_check_branch
        %161 = sbr.rel (%p159) target = $region24
      $region23: #{tpu_custom_call.1} parent=5 // pred_region
        // Predicated region
        $region25: #{tpu_custom_call.1} parent=23 // pred_check
          %p162 = pneg %p50
        $region26: #{tpu_custom_call.1} parent=23 // pred_check_branch
          %164 = sbr.rel (%p162) target = $region28
        $region27: #{tpu_custom_call.1} parent=23 // pred_region
          %s165 = sand.u32 %s40, 1
          %s166 = scalar_lea.sflag [#allocation3], %s165
          %s167 = sand.u32 %s40, 1
          %s168 = smul.addr %s167, 8
          %s169 = scalar_lea.vmem [#allocation2], %s168
          %171 = vsyncadd %s166, 0
          %s172 = sadd.s32 %s24, %s23
          %s173 = smul.addr %s172, 8
          %s174 = scalar_lea.hbm %s0, %s173
          %s176 = sshll.u32 %s174, 4
          %s177 = int_to_ptr.hbm [resolvable:$true] %s176
          %s178 = sshll.u32 %s169, 4
          %s179 = int_to_ptr.vmem [resolvable:$true] %s178
          %181 = dma.hbm_to_vmem [thread:$0]  %s177, 128, %s179, %s166
        $region28: #{tpu_custom_call.1} parent=23 // pred_fallthru
          _
      $region24: #{tpu_custom_call.1} parent=5 // pred_fallthru
        _
      %p182 = scmp.le.s32.totalorder 1, %s16
      %p183 = scmp.lt.s32.totalorder %s16, 3
      %p184 = pnand %p182, %p183
      %p185 = pneg %p184
      // Predicated region
      $region29: #{tpu_custom_call.1} parent=5 // pred_check
        _
      $region30: #{tpu_custom_call.1} parent=5 // pred_check_branch
        %187 = sbr.rel (%p184) target = $region32
      $region31: #{tpu_custom_call.1} parent=5 // pred_region
        %s188 = ssub.s32 %s16, 1
        %s189 = sand.u32 %s43, 1
        %s190 = scalar_lea.sflag [#allocation3], %s189
        %s191 = sand.u32 %s43, 1
        %s192 = smul.addr %s191, 8
        %s193 = scalar_lea.vmem [#allocation2], %s192
        // Predicated region
        $region33: #{tpu_custom_call.1} parent=31 // pred_check
          %p194 = pneg %p56
        $region34: #{tpu_custom_call.1} parent=31 // pred_check_branch
          %196 = sbr.rel (%p194) target = $region36
        $region35: #{tpu_custom_call.1} parent=31 // pred_region
          %198 = dma.done %s190, 128
        $region36: #{tpu_custom_call.1} parent=31 // pred_fallthru
          _
        // Predicated region
        $region37: #{tpu_custom_call.1} parent=31 // pred_check
          %p199 = pneg %p77
        $region38: #{tpu_custom_call.1} parent=31 // pred_check_branch
          %201 = sbr.rel (%p199) target = $region40
        $region39: #{tpu_custom_call.1} parent=31 // pred_region
          %203 = dma.done [#allocation6], 512
        $region40: #{tpu_custom_call.1} parent=31 // pred_fallthru
          _
        %s204 = sand.u32 %s43, 1
        %s205 = scalar_lea.sflag [#allocation3], %s204
        %s206 = sand.u32 %s43, 1
        %s207 = smul.addr %s206, 8
        %s208 = scalar_lea.vmem [#allocation2], %s207
        %p209 = pneg %p56
        %p210 = pneg %p53
        %p211 = pneg %p77
        %p212 = pneg %p74
        %p213 = pneg %p98
        %p214 = pneg %p95
        %p215 = pneg %p126
        %p216 = pneg %p123
        %s217 = sand.u32 %s113, 1
        %s218 = scalar_lea.sflag [#allocation4], %s217
        %s219 = sand.u32 %s113, 1
        %s220 = smul.addr %s219, 64
        %s221 = scalar_lea.vmem [#allocation7], %s220
        %v222 = vld [vmem:[%s193] sm:$0xff]
        %v223 = vld [vmem:[#allocation5] sm:$0xff]
        %v224 = vld [vmem:[#allocation5 + $0x8] sm:$0xff]
        %v225 = vld [vmem:[#allocation5 + $0x10] sm:$0xff]
        %v226 = vld [vmem:[#allocation5 + $0x18] sm:$0xff]
        %vm227 = vcmask 261120
        %v229 = vsel %vm227, %v222, 0
        %231 = vmatpush.msra.mxu0 0.0
        %232 = vmatpush.msra.mxu0 0.0
        %233 = vmatpush.msra.mxu0 0.0
        %234 = vmatpush.msra.mxu0 0.0
        %235 = vmatpush.msra.mxu0 0.0
        %236 = vmatpush.msra.mxu0 0.0
        %237 = vmatpush.msra.mxu0 0.0
        %238 = vmatpush.msra.mxu0 0.0
        %239 = vmatpush.msra.mxu0 0.0
        %240 = vmatpush.msra.mxu0 0.0
        %241 = vmatpush.msra.mxu0 0.0
        %242 = vmatpush.msra.mxu0 0.0
        %243 = vmatpush.msra.mxu0 %v226
        %244 = vmatpush.msra.mxu0 %v225
        %245 = vmatpush.msra.mxu0 %v224
        %246 = vmatpush.msra.mxu0 %v223
        %247 = vmatmul.f32.gmra.mxu0 %v229
        %v248 = vpop.f32.mrf.mxu0
        %v249 = vadd.f32 0.0, %v248
        %250 = vdwg.mxu0
        %v251 = vld [vmem:[%s2] sm:$0x1]
        %v253 = vperm.slane %v251, 0
        %254 = vrot.lane.b32.xlu0 %v253, 32
        %v255 = vpop.permute.xlu0 %254
        %v257 = vadd.f32 %v249, %v255
        %vm258 = vcmask 64512
        %259 = vst.msk [vmem:[%s221] sm:$0xff] %vm258, %v249
        %261 = vrot.lane.b32.xlu0 %v257, 96
        %v262 = vpop.permute.xlu0 %261
        %s264 = scalar_lea.vmem %s221, 32 [#allocation7]
        %265 = vst.msk [vmem:[%s264] sm:$0xff] %vm258, %v262
        %267 = vrot.lane.b32.xlu0 %v249, 120
        %v268 = vpop.permute.xlu0 %267
        %s270 = scalar_lea.vmem %s221, 8 [#allocation7]
        %271 = vst.msk [vmem:[%s270] sm:$0xff] %vm258, %v268
        %272 = vrot.lane.b32.xlu0 %v257, 88
        %v273 = vpop.permute.xlu0 %272
        %s275 = scalar_lea.vmem %s221, 40 [#allocation7]
        %276 = vst.msk [vmem:[%s275] sm:$0xff] %vm258, %v273
        %277 = vrot.lane.b32.xlu0 %v249, 112
        %v278 = vpop.permute.xlu0 %277
        %s280 = scalar_lea.vmem %s221, 16 [#allocation7]
        %281 = vst.msk [vmem:[%s280] sm:$0xff] %vm258, %v278
        %282 = vrot.lane.b32.xlu0 %v257, 80
        %v283 = vpop.permute.xlu0 %282
        %s285 = scalar_lea.vmem %s221, 48 [#allocation7]
        %286 = vst.msk [vmem:[%s285] sm:$0xff] %vm258, %v283
        %287 = vrot.lane.b32.xlu0 %v249, 104
        %v288 = vpop.permute.xlu0 %287
        %s290 = scalar_lea.vmem %s221, 24 [#allocation7]
        %291 = vst.msk [vmem:[%s290] sm:$0xff] %vm258, %v288
        %292 = vrot.lane.b32.xlu0 %v257, 72
        %v293 = vpop.permute.xlu0 %292
        %s295 = scalar_lea.vmem %s221, 56 [#allocation7]
        %296 = vst.msk [vmem:[%s295] sm:$0xff] %vm258, %v293
        %s297 = sand.u32 %s113, 1
        %s298 = scalar_lea.sflag [#allocation4], %s297
        %s299 = sand.u32 %s113, 1
        %s300 = smul.addr %s299, 64
        %s301 = scalar_lea.vmem [#allocation7], %s300
        // Predicated region
        $region41: #{tpu_custom_call.1} parent=31 // pred_check
          %p302 = pneg %p123
        $region42: #{tpu_custom_call.1} parent=31 // pred_check_branch
          %304 = sbr.rel (%p302) target = $region44
        $region43: #{tpu_custom_call.1} parent=31 // pred_region
          %306 = vsyncadd %s298, 0
          %s307 = smul.addr %s25, 8
          %s308 = sadd.s32 %s26, %s307
          %s309 = smul.addr %s308, 8
          %s310 = scalar_lea.hbm %s3, %s309
          %s311 = sshll.u32 %s301, 4
          %s312 = int_to_ptr.vmem [resolvable:$true] %s311
          %s313 = sshll.u32 %s310, 4
          %s314 = int_to_ptr.hbm [resolvable:$true] %s313
          %319 = dma.vmem_to_hbm [thread:$0]  %s312, 1024, %s314, %s298, 128, 128, 8
        $region44: #{tpu_custom_call.1} parent=31 // pred_fallthru
          _
      $region32: #{tpu_custom_call.1} parent=5 // pred_fallthru
        _
      %p320 = scmp.le.s32.totalorder 2, %s16
      // Predicated region
      $region45: #{tpu_custom_call.1} parent=5 // pred_check
        %p321 = pneg %p320
      $region46: #{tpu_custom_call.1} parent=5 // pred_check_branch
        %323 = sbr.rel (%p321) target = $region48
      $region47: #{tpu_custom_call.1} parent=5 // pred_region
        %s324 = ssub.s32 %s16, 2
        // Predicated region
        $region49: #{tpu_custom_call.1} parent=47 // pred_check
          %p325 = pneg %p129
        $region50: #{tpu_custom_call.1} parent=47 // pred_check_branch
          %327 = sbr.rel (%p325) target = $region52
        $region51: #{tpu_custom_call.1} parent=47 // pred_region
          %s328 = sand.u32 %s114, 1
          %s329 = scalar_lea.sflag [#allocation4], %s328
          %s330 = sand.u32 %s114, 1
          %s331 = smul.addr %s330, 64
          %s332 = scalar_lea.vmem [#allocation7], %s331
          %334 = dma.done %s329, 1024
        $region52: #{tpu_custom_call.1} parent=47 // pred_fallthru
          _
      $region48: #{tpu_custom_call.1} parent=5 // pred_fallthru
        _
    $region6: #{tpu_custom_call.1} parent=1 // loop_footer
      %s20 = sadd.s32 1, %s16
    $region7: #{tpu_custom_call.1} parent=1 // loop_footer_branch
      %15 = sbr.rel target = $region3
    $region8: #{tpu_custom_call.1} parent=1 // loop_exit
      _
    %335 = vsyncpa [#allocation3], 1
    %s336 = scalar_lea.sflag [#allocation3], 1
    %337 = vsyncpa %s336, 1
    %338 = vsyncpa [#allocation6], 1
    %339 = vsyncpa [#allocation4], 1
    %s340 = scalar_lea.sflag [#allocation4], 1
    %341 = vsyncpa %s340, 1

</llo_original>
